<compile_context>
chip_gen: v7x
topology: tpu7x:2x2x1
jax: 0.10.0
libtpu: 0.0.40
codegen_flags: <defaults>
</compile_context>

<pallas_src>
import functools

import jax
import jax.numpy as jnp
from jax.experimental import pallas as pl
from jax.experimental.pallas import tpu as pltpu

EPS = 1e-6


def _slc_kernel(x_ref, *refs, fold_affine):
    if fold_affine:
        w_ref, b_ref, o_ref = refs
        gamma_ref = beta_ref = None
    else:
        gamma_ref, beta_ref, w_ref, b_ref, o_ref = refs

    x = x_ref[...].astype(jnp.float32)
    d = x.shape[-1]

    # --- LayerNorm (matches the PyTorch module exactly) ---
    # mean over last dim; torch.std is unbiased (divide by N-1); eps added to std.
    # (Breaks for d == 1, like the original module.)
    mean = jnp.mean(x, axis=-1, keepdims=True)
    centered = x - mean
    var_unbiased = jnp.sum(centered * centered, axis=-1, keepdims=True) * (1.0 / (d - 1))
    # Exact EUP reciprocal on the (TM, 1) column, then broadcast multiply — avoids a
    # full (TM, D) VALU divide, and approx=False costs nothing (EUP slot has slack).
    inv_std = pl.reciprocal(jnp.sqrt(var_unbiased) + EPS)
    normed = centered * inv_std
    if not fold_affine:
        normed = normed * gamma_ref[...] + beta_ref[...]

    # --- sublayer: Linear(D, D) on the MXU (bf16 operands, f32 accumulation) ---
    y = jnp.dot(normed.astype(w_ref.dtype), w_ref[...],
                preferred_element_type=jnp.float32) + b_ref[...]

    # --- dropout: eval mode (identity) ---
    # TODO(synk): training-mode dropout would use pltpu.prng_seed + pltpu.prng_random_bits
    # to build a keep-mask and scale by 1/(1-p); residual still adds pre-dropout x.

    # --- residual add ---
    o_ref[...] = (x + y).astype(o_ref.dtype)


def _round_up(n, m):
    return ((n + m - 1) // m) * m


def _vmem_budget_bytes():
    """Generation-aware VMEM budget: physical capacity minus Mosaic headroom."""
    cap = 64 << 20  # conservative fallback (v7x per-TC VMEM)
    try:
        cap = int(getattr(pltpu.get_tpu_info(), "vmem_capacity_bytes", cap))
    except Exception:
        pass
    headroom = (24 << 20) if cap >= (96 << 20) else (12 << 20)
    return max(cap - headroom, 16 << 20)


def sublayer_connection(x, gamma, beta, w, b, *, tile_m=None,
                        mxu_dtype=jnp.bfloat16, fold_ln_affine=False):
    """x: (B, S, D). Returns x + Linear(LayerNorm(x)) (eval-mode dropout).

    Accepts f32 or bf16 activations; LayerNorm math is always f32 in-kernel and the
    output keeps x.dtype (so bf16 callers halve the HBM activation traffic).
    """
    B, S, D = x.shape
    M = B * S
    x2 = x.reshape(M, D)  # free view for contiguous (B, S, D); no pad, no slice.

    io_bytes = jnp.dtype(x.dtype).itemsize
    w_bytes = D * D * jnp.dtype(mxu_dtype).itemsize
    budget = _vmem_budget_bytes()

    # Row-tile selection: largest multiple of 8 that fits the budget, capped at
    # 2048 (small D) / 1024 (large D). Shrink tile_m rather than lowering the
    # VMEM limit below the estimate.
    cap = tile_m if tile_m is not None else (2048 if D <= 1024 else 1024)
    tm = min(_round_up(M, 8), max(_round_up(int(cap), 8), 8))

    def est(t):
        return (2 * t * D * io_bytes      # double-buffered input tiles
                + 2 * t * D * io_bytes    # double-buffered output tiles
                + 2 * w_bytes             # resident W (double-buffered allocation)
                + 4 * t * D * 4           # in-kernel f32 intermediates headroom
                + 8 * D * 4)              # gamma / beta / bias vectors

    while tm > 8 and est(tm) > budget:
        tm = max(_round_up(tm // 2, 8), 8)
    # TODO(synk): for very large D (>= ~4096 on v7x), tile W along N (extra grid axis
    # over output columns) or K (f32 accumulator + pl.when init/finalize), and/or
    # single-buffer the constant-index W block via pipeline_mode=pl.Buffered(1),
    # instead of keeping it fully resident.

    vmem_limit = int(min(budget, max(est(tm) + (4 << 20), 16 << 20)))

    grid = (pl.cdiv(M, tm),)  # partial last block masked by Pallas — no host pad/slice.

    x_spec = pl.BlockSpec((tm, D), lambda i: (i, 0))
    vec_spec = pl.BlockSpec((1, D), lambda i: (0, 0))
    w_spec = pl.BlockSpec((D, D), lambda i: (0, 0))
    out_spec = pl.BlockSpec((tm, D), lambda i: (i, 0))

    if fold_ln_affine:
        # Fold LayerNorm's affine into the Linear: w' = diag(gamma) @ W, b' = beta @ W + b.
        # Saves two full-tile VALU passes per step (mainly pays on v5e).
        w32 = w.astype(jnp.float32)
        w_eff = (gamma.astype(jnp.float32).reshape(D, 1) * w32).astype(mxu_dtype)
        b_eff = (beta.astype(jnp.float32) @ w32 + b.astype(jnp.float32)).reshape(1, D)
        operands = (x2, w_eff, b_eff)
        in_specs = [x_spec, w_spec, vec_spec]
    else:
        operands = (x2,
                    gamma.reshape(1, D).astype(jnp.float32),
                    beta.reshape(1, D).astype(jnp.float32),
                    w.astype(mxu_dtype),
                    b.reshape(1, D).astype(jnp.float32))
        in_specs = [x_spec, vec_spec, vec_spec, w_spec, vec_spec]

    kernel = functools.partial(_slc_kernel, fold_affine=fold_ln_affine)

    out = pl.pallas_call(
        kernel,
        out_shape=jax.ShapeDtypeStruct((M, D), x.dtype),
        grid_spec=pltpu.PrefetchScalarGridSpec(
            num_scalar_prefetch=0,
            grid=grid,
            in_specs=in_specs,
            out_specs=out_spec,
        ),
        compiler_params=pltpu.CompilerParams(
            dimension_semantics=("parallel",),   # row tiles shard across v7x's 2 TCs
            vmem_limit_bytes=vmem_limit,
        ),
    )(*operands)

    return out.reshape(B, S, D)


def _reference(x, gamma, beta, w, b):
    # Pure-JAX f32 reference mirroring the PyTorch semantics (eval-mode dropout).
    x = x.astype(jnp.float32)
    d = x.shape[-1]
    mean = jnp.mean(x, axis=-1, keepdims=True)
    centered = x - mean
    std = jnp.sqrt(jnp.sum(centered * centered, axis=-1, keepdims=True) / (d - 1))
    normed = gamma * centered / (std + EPS) + beta
    return x + (normed @ w + b)


if __name__ == "__main__":
    B, S, D = 2, 8, 32  # small demo; real deployments should keep D % 128 == 0
    key = jax.random.PRNGKey(0)
    kx, kw, kg, kb = jax.random.split(key, 4)

    x = jax.random.normal(kx, (B, S, D), dtype=jnp.float32)
    # Module __init__ uses a_2=ones, b_2=zeros; use non-trivial values here so the
    # affine path is actually exercised.
    gamma = 1.0 + 0.1 * jax.random.normal(kg, (D,), dtype=jnp.float32)
    beta = 0.1 * jax.random.normal(kb, (D,), dtype=jnp.float32)
    # Sublayer Linear(D, D): small random weights, zero bias.
    w = 0.02 * jax.random.normal(kw, (D, D), dtype=jnp.float32)
    b = jnp.zeros((D,), dtype=jnp.float32)

    ref = _reference(x, gamma, beta, w, b)

    out = sublayer_connection(x, gamma, beta, w, b)
    out = jax.block_until_ready(out)
    assert out.shape == (B, S, D)
    assert jnp.allclose(out, ref, atol=1e-2, rtol=1e-2), "mismatch vs reference (affine path)"

    out_folded = sublayer_connection(x, gamma, beta, w, b, fold_ln_affine=True)
    out_folded = jax.block_until_ready(out_folded)
    assert jnp.allclose(out_folded, ref, atol=1e-2, rtol=1e-2), "mismatch vs reference (folded path)"

    print("KERNEL_OK")
</pallas_src>

<mosaic_0001>
module attributes {stable_mosaic.version = 11 : i64} {
  func.func @_slc_kernel(%arg0: i32, %arg1: memref<16x32xf32, #tpu.memory_space<vmem>>, %arg2: memref<1x32xf32, #tpu.memory_space<vmem>>, %arg3: memref<1x32xf32, #tpu.memory_space<vmem>>, %arg4: memref<32x32xbf16, #tpu.memory_space<vmem>>, %arg5: memref<1x32xf32, #tpu.memory_space<vmem>>, %arg6: memref<16x32xf32, #tpu.memory_space<vmem>>) attributes {dimension_semantics = [#tpu.dimension_semantics<parallel>], iteration_bounds = array<i64: 1>, scalar_prefetch = 0 : i64, scratch_operands = 0 : i64, tpu.core_type = #tpu.core_type<tc>, window_params = [{transform_indices = @transform_0, window_bounds = array<i64: 16, 32>}, {pipeline_mode = #tpu.pipeline_mode<synchronous>, transform_indices = @transform_1, window_bounds = array<i64: 1, 32>}, {pipeline_mode = #tpu.pipeline_mode<synchronous>, transform_indices = @transform_2, window_bounds = array<i64: 1, 32>}, {pipeline_mode = #tpu.pipeline_mode<synchronous>, transform_indices = @transform_3, window_bounds = array<i64: 32, 32>}, {pipeline_mode = #tpu.pipeline_mode<synchronous>, transform_indices = @transform_4, window_bounds = array<i64: 1, 32>}, {transform_indices = @transform_5, window_bounds = array<i64: 16, 32>}]} {
    %c0 = arith.constant 0 : index
    %c0_0 = arith.constant 0 : index
    %0 = vector.load %arg1[%c0, %c0_0] : memref<16x32xf32, #tpu.memory_space<vmem>>, vector<16x32xf32>
    %cst = arith.constant dense<0.000000e+00> : vector<16xf32>
    %1 = vector.multi_reduction <add>, %0, %cst [1] : vector<16x32xf32> to vector<16xf32>
    %2 = vector.shape_cast %1 : vector<16xf32> to vector<16x1xf32>
    %cst_1 = arith.constant 3.200000e+01 : f32
    %3 = vector.broadcast %cst_1 : f32 to vector<16x1xf32>
    %4 = arith.divf %2, %3 : vector<16x1xf32>
    %5 = vector.broadcast %4 : vector<16x1xf32> to vector<16x32xf32>
    %6 = arith.subf %0, %5 : vector<16x32xf32>
    %7 = arith.mulf %6, %6 : vector<16x32xf32>
    %cst_2 = arith.constant dense<0.000000e+00> : vector<16xf32>
    %8 = vector.multi_reduction <add>, %7, %cst_2 [1] : vector<16x32xf32> to vector<16xf32>
    %9 = vector.shape_cast %8 : vector<16xf32> to vector<16x1xf32>
    %cst_3 = arith.constant 0.0322580636 : f32
    %10 = vector.broadcast %cst_3 : f32 to vector<16x1xf32>
    %11 = arith.mulf %9, %10 : vector<16x1xf32>
    %12 = math.sqrt %11 : vector<16x1xf32>
    %cst_4 = arith.constant 9.99999997E-7 : f32
    %13 = vector.broadcast %cst_4 : f32 to vector<16x1xf32>
    %14 = arith.addf %12, %13 : vector<16x1xf32>
    %15 = tpu.reciprocal %14 : vector<16x1xf32> -> vector<16x1xf32>
    %16 = vector.broadcast %15 : vector<16x1xf32> to vector<16x32xf32>
    %17 = arith.mulf %6, %16 : vector<16x32xf32>
    %c0_5 = arith.constant 0 : index
    %c0_6 = arith.constant 0 : index
    %18 = vector.load %arg2[%c0_5, %c0_6] : memref<1x32xf32, #tpu.memory_space<vmem>>, vector<1x32xf32>
    %19 = vector.broadcast %18 : vector<1x32xf32> to vector<16x32xf32>
    %20 = arith.mulf %17, %19 : vector<16x32xf32>
    %c0_7 = arith.constant 0 : index
    %c0_8 = arith.constant 0 : index
    %21 = vector.load %arg3[%c0_7, %c0_8] : memref<1x32xf32, #tpu.memory_space<vmem>>, vector<1x32xf32>
    %22 = vector.broadcast %21 : vector<1x32xf32> to vector<16x32xf32>
    %23 = arith.addf %20, %22 : vector<16x32xf32>
    %24 = arith.truncf %23 : vector<16x32xf32> to vector<16x32xbf16>
    %c0_9 = arith.constant 0 : index
    %c0_10 = arith.constant 0 : index
    %25 = vector.load %arg4[%c0_9, %c0_10] : memref<32x32xbf16, #tpu.memory_space<vmem>>, vector<32x32xbf16>
    %cst_11 = arith.constant dense<0.000000e+00> : vector<16x32xf32>
    %26 = tpu.matmul %24, %25, %cst_11 {dimension_numbers = #tpu.dot_dimension_numbers<[1], [0], [0], [1], [0, 0, 1, 1], [], []>} : vector<16x32xbf16>, vector<32x32xbf16>, vector<16x32xf32> -> vector<16x32xf32>
    %c0_12 = arith.constant 0 : index
    %c0_13 = arith.constant 0 : index
    %27 = vector.load %arg5[%c0_12, %c0_13] : memref<1x32xf32, #tpu.memory_space<vmem>>, vector<1x32xf32>
    %28 = vector.broadcast %27 : vector<1x32xf32> to vector<16x32xf32>
    %29 = arith.addf %26, %28 : vector<16x32xf32>
    %30 = arith.addf %0, %29 : vector<16x32xf32>
    %c0_14 = arith.constant 0 : index
    %c0_15 = arith.constant 0 : index
    %31 = vector.load %arg6[%c0_14, %c0_15] : memref<16x32xf32, #tpu.memory_space<vmem>>, vector<16x32xf32>
    tpu.vector_store %arg6[%c0_14, %c0_15], %30 {strides = array<i32>} : memref<16x32xf32, #tpu.memory_space<vmem>>, vector<16x32xf32>,
    return
  }
  func.func @transform_0(%arg0: i32) -> (i32, i32) {
    %c0_i32 = arith.constant 0 : i32
    %c0_i32_0 = arith.constant 0 : i32
    return %arg0, %c0_i32 : i32, i32
  }
  func.func @transform_1(%arg0: i32) -> (i32, i32) {
    %c0_i32 = arith.constant 0 : i32
    %c0_i32_0 = arith.constant 0 : i32
    %c0_i32_1 = arith.constant 0 : i32
    return %c0_i32, %c0_i32_0 : i32, i32
  }
  func.func @transform_2(%arg0: i32) -> (i32, i32) {
    %c0_i32 = arith.constant 0 : i32
    %c0_i32_0 = arith.constant 0 : i32
    %c0_i32_1 = arith.constant 0 : i32
    return %c0_i32, %c0_i32_0 : i32, i32
  }
  func.func @transform_3(%arg0: i32) -> (i32, i32) {
    %c0_i32 = arith.constant 0 : i32
    %c0_i32_0 = arith.constant 0 : i32
    %c0_i32_1 = arith.constant 0 : i32
    return %c0_i32, %c0_i32_0 : i32, i32
  }
  func.func @transform_4(%arg0: i32) -> (i32, i32) {
    %c0_i32 = arith.constant 0 : i32
    %c0_i32_0 = arith.constant 0 : i32
    %c0_i32_1 = arith.constant 0 : i32
    return %c0_i32, %c0_i32_0 : i32, i32
  }
  func.func @transform_5(%arg0: i32) -> (i32, i32) {
    %c0_i32 = arith.constant 0 : i32
    %c0_i32_0 = arith.constant 0 : i32
    return %arg0, %c0_i32 : i32, i32
  }
}

</mosaic_0001>

<llo_original>
// kernel: tpu_custom_call.1
$region0: #{tpu_custom_call.1}
  #allocation0 [shape = 'u32[]', space=smem, size = 0x4, offset = 0x4, fixed_abs, tag = 'smem constant byte address 0x4 - core index']
  #allocation1 [shape = 'u32[144,128]{1,0:T(1,128)}', space=vmem, size = 0x12000, scoped, tag = 'internal scratch']
  %s0 = inlined_call_operand.hbm [shape: f32[16,32], index: 0, kind: input, shape index: {}]
  %s1 = inlined_call_operand.vmem [shape: f32[1,32], index: 1, kind: input, shape index: {}]
  %s2 = inlined_call_operand.vmem [shape: f32[1,32], index: 2, kind: input, shape index: {}]
  %s3 = inlined_call_operand.hbm [shape: bf16[32,32], index: 3, kind: input, shape index: {}]
  %s4 = inlined_call_operand.vmem [shape: f32[1,32], index: 4, kind: input, shape index: {}]
  %s5 = inlined_call_operand.hbm [shape: f32[16,32], index: 5, kind: output, shape index: {}]
  %s6 = sld [smem:[#allocation0]]
  $region38: #{tpu_custom_call.1} parent=0
    _
  %s8 = ssub.s32 1, %s6
  %s9 = scalar_select 0, %s8, %s6
  $region1: #{tpu_custom_call.1} parent=0
    #allocation2 [shape = 'u8[8192]{0}', space=vmem, size = 0x2000, scoped, tag = 'input window, operand 0, single buffered']
    #allocation3 [shape = 's32[1]{0}', space=sflag, size = 0x4, scoped, tag = 'scoped memory for tpu_custom_call.1']
    #allocation4 [shape = 's32[1]{0}', space=sflag, size = 0x4, scoped, tag = 'scoped memory for tpu_custom_call.1']
    #allocation5 [shape = 'u8[8192]{0}', space=vmem, size = 0x2000, scoped, tag = 'input window, operand 3, single buffered']
    #allocation6 [shape = 's32[1]{0}', space=sflag, size = 0x4, scoped, tag = 'scoped memory for tpu_custom_call.1']
    #allocation7 [shape = 'u8[8192]{0}', space=vmem, size = 0x2000, scoped, tag = 'output window, operand 0, single buffered']
    %10 = vsyncpa [#allocation3], 0
    %11 = vsyncpa [#allocation6], 0
    %12 = vsyncpa [#allocation4], 0
    // Predicated region
    $region2: #{tpu_custom_call.1} parent=1 // pred_check
      _
    $region3: #{tpu_custom_call.1} parent=1 // pred_check_branch
      %14 = sbr.rel (0) target = $region5
    $region4: #{tpu_custom_call.1} parent=1 // pred_region
      %s16 = ssub.s32 256, 256
      %17 = vsyncadd [#allocation3], %s16
      %s18 = sshll.u32 [#allocation2], 4
      %s19 = int_to_ptr.vmem [resolvable:$true] %s18
      %24 = dma.hbm_to_vmem [thread:$0]  %s0, 256, %s19, [#allocation3], 128, 128, 8
    $region5: #{tpu_custom_call.1} parent=1 // pred_fallthru
      _
    // Predicated region
    $region6: #{tpu_custom_call.1} parent=1 // pred_check
      _
    $region7: #{tpu_custom_call.1} parent=1 // pred_check_branch
      %26 = sbr.rel (0) target = $region9
    $region8: #{tpu_custom_call.1} parent=1 // pred_region
      _
    $region9: #{tpu_custom_call.1} parent=1 // pred_fallthru
      _
    // Predicated region
    $region10: #{tpu_custom_call.1} parent=1 // pred_check
      _
    $region11: #{tpu_custom_call.1} parent=1 // pred_check_branch
      %28 = sbr.rel (0) target = $region13
    $region12: #{tpu_custom_call.1} parent=1 // pred_region
      _
    $region13: #{tpu_custom_call.1} parent=1 // pred_fallthru
      _
    // Predicated region
    $region14: #{tpu_custom_call.1} parent=1 // pred_check
      _
    $region15: #{tpu_custom_call.1} parent=1 // pred_check_branch
      %30 = sbr.rel (0) target = $region17
    $region16: #{tpu_custom_call.1} parent=1 // pred_region
      %s32 = ssub.s32 256, 256
      %33 = vsyncadd [#allocation6], %s32
      %s34 = sshll.u32 [#allocation5], 4
      %s35 = int_to_ptr.vmem [resolvable:$true] %s34
      %40 = dma.hbm_to_vmem [thread:$0]  %s3, 256, %s35, [#allocation6], 64, 64, 4
    $region17: #{tpu_custom_call.1} parent=1 // pred_fallthru
      _
    // Predicated region
    $region18: #{tpu_custom_call.1} parent=1 // pred_check
      _
    $region19: #{tpu_custom_call.1} parent=1 // pred_check_branch
      %42 = sbr.rel (0) target = $region21
    $region20: #{tpu_custom_call.1} parent=1 // pred_region
      _
    $region21: #{tpu_custom_call.1} parent=1 // pred_fallthru
      _
    // Predicated region
    $region22: #{tpu_custom_call.1} parent=1 // pred_check
      _
    $region23: #{tpu_custom_call.1} parent=1 // pred_check_branch
      %44 = sbr.rel (0) target = $region25
    $region24: #{tpu_custom_call.1} parent=1 // pred_region
      %45 = dma.done [#allocation3], 256
    $region25: #{tpu_custom_call.1} parent=1 // pred_fallthru
      _
    // Predicated region
    $region26: #{tpu_custom_call.1} parent=1 // pred_check
      _
    $region27: #{tpu_custom_call.1} parent=1 // pred_check_branch
      %47 = sbr.rel (0) target = $region29
    $region28: #{tpu_custom_call.1} parent=1 // pred_region
      %48 = dma.done [#allocation6], 256
    $region29: #{tpu_custom_call.1} parent=1 // pred_fallthru
      _
    %v50 = vld [vmem:[#allocation2] sm:$0xff]
    %v51 = vld [vmem:[#allocation2 + $0x8] sm:$0xff]
    %vm52 = vcmask 261120
    %v53 = vsel %vm52, %v50, 0.0
    %54 = vadd.xlane.f32.xlu0 %v53
    %v55 = vpop.xlane.xlu0 %54
    %v56 = vsel %vm52, %v51, 0.0
    %57 = vadd.xlane.f32.xlu0 %v56
    %v58 = vpop.xlane.xlu0 %57
    %v59 = vrcp.pop 32.0
    %v60 = vmul.f32 %v55, %v59
    %v61 = vmul.f32 %v58, %v59
    %v62 = vsub.f32 %v50, %v60
    %v63 = vsub.f32 %v51, %v61
    %v64 = vmul.f32 %v62, %v62
    %v65 = vmul.f32 %v63, %v63
    %v66 = vsel %vm52, %v64, 0.0
    %67 = vadd.xlane.f32.xlu0 %v66
    %v68 = vpop.xlane.xlu0 %67
    %v69 = vsel %vm52, %v65, 0.0
    %70 = vadd.xlane.f32.xlu0 %v69
    %v71 = vpop.xlane.xlu0 %70
    %v72 = vmul.f32 %v68, 0.032258064
    %v73 = vmul.f32 %v71, 0.032258064
    %v74 = vrsqrt.pop %v72
    %v75 = vmul.f32 %v72, %v74
    %vm76 = vcmp.eq.f32.partialorder %v72, inf
    %v77 = vsel %vm76, %v72, %v75
    %vm78 = vcmp.eq.f32.partialorder %v72, 0.0
    %v79 = vand.u32 %v72, 2147483648
    %v80 = vsel %vm78, %v79, %v77
    %v81 = vrsqrt.pop %v73
    %v82 = vmul.f32 %v73, %v81
    %vm83 = vcmp.eq.f32.partialorder %v73, inf
    %v84 = vsel %vm83, %v73, %v82
    %vm85 = vcmp.eq.f32.partialorder %v73, 0.0
    %v86 = vand.u32 %v73, 2147483648
    %v87 = vsel %vm85, %v86, %v84
    %v88 = vadd.f32 %v80, 1e-06
    %v89 = vadd.f32 %v87, 1e-06
    %v90 = vrcp.pop %v88
    %v91 = vrcp.pop %v89
    %v92 = vmul.f32 %v62, %v90
    %v93 = vmul.f32 %v63, %v91
    %v94 = vld [vmem:[%s1] sm:$0x1]
    %v96 = vlaneseq
    %v97 = vshrl.u32 %v96, 7
    %v98 = vsub.s32 0, %v97
    %v99 = vrot.slane %v94, %v98
    %v101 = vmul.f32 %v92, %v99
    %v102 = vmul.f32 %v93, %v99
    %v103 = vld [vmem:[%s2] sm:$0x1]
    %v105 = vlaneseq
    %v106 = vshrl.u32 %v105, 7
    %v107 = vsub.s32 0, %v106
    %v108 = vrot.slane %v103, %v107
    %v110 = vadd.f32 %v101, %v108
    %v111 = vadd.f32 %v102, %v108
    %v112 = vpack.c.bf16 %v111, %v110
    %v113 = vld [vmem:[#allocation5] sm:$0xf]
    %v114 = vld [vmem:[#allocation5 + $0x4] sm:$0xf]
    %v115 = vld [vmem:[#allocation5 + $0x8] sm:$0xf]
    %v116 = vld [vmem:[#allocation5 + $0xc] sm:$0xf]
    %v117 = vld [vmem:[%s4] sm:$0x1]
    %v119 = vlaneseq
    %v120 = vshrl.u32 %v119, 7
    %v121 = vsub.s32 0, %v120
    %v122 = vrot.slane %v117, %v121
    %v128 = vunpack.c.l.b16 %v113
    %v129 = vunpack.c.l.b16 %v114
    %v130 = vunpack.c.l.b16 %v115
    %v131 = vunpack.c.l.b16 %v116
    %v132 = vpack.c.b16 %v129, %v128
    %v133 = vpack.c.b16 %v131, %v130
    %v137 = vsel %vm52, %v112, 0
    %139 = vmatprep.subr.bf16.mxu0 0
    %140 = vmatpush1.bf16.msra.mxu0 %v132
    %141 = vmatprep.subr.bf16.mxu0 0
    %142 = vmatpush1.bf16.msra.mxu0 %v133
    %143 = vmatprep.subr.bf16.mxu0 0
    %144 = vmatpush1.bf16.msra.mxu0 0
    %145 = vmatprep.subr.bf16.mxu0 0
    %146 = vmatpush1.bf16.msra.mxu0 0
    %147 = vmatprep.subr.bf16.mxu0 0
    %148 = vmatpush1.bf16.msra.mxu0 0
    %149 = vmatprep.subr.bf16.mxu0 0
    %150 = vmatpush1.bf16.msra.mxu0 0
    %151 = vmatprep.subr.bf16.mxu0 0
    %152 = vmatpush1.bf16.msra.mxu0 0
    %153 = vmatprep.subr.bf16.mxu0 0
    %154 = vmatpush1.bf16.msra.mxu0 0
    %155 = vmatprep.subr.bf16.mxu0 0
    %156 = vmatpush1.bf16.msra.mxu0 0
    %157 = vmatprep.subr.bf16.mxu0 0
    %158 = vmatpush1.bf16.msra.mxu0 0
    %159 = vmatprep.subr.bf16.mxu0 0
    %160 = vmatpush1.bf16.msra.mxu0 0
    %161 = vmatprep.subr.bf16.mxu0 0
    %162 = vmatpush1.bf16.msra.mxu0 0
    %163 = vmatprep.subr.bf16.mxu0 0
    %164 = vmatpush1.bf16.msra.mxu0 0
    %165 = vmatprep.subr.bf16.mxu0 0
    %166 = vmatpush1.bf16.msra.mxu0 0
    %167 = vmatprep.subr.bf16.mxu0 0
    %168 = vmatpush1.bf16.msra.mxu0 0
    %169 = vmatprep.subr.bf16.mxu0 0
    %170 = vmatpush1.bf16.msra.mxu0 0
    %171 = vmatprep.mubr.bf16.mxu0 0
    %172 = vmatmul.mubr.bf16.gmra.mrb[0].mxu0 %v137
    %v173 = vpop.f32.mrb[0].mxu0
    %v174 = vadd.f32 %v122, %v173
    %v175 = vpop.f32.mrb[0].mxu0
    %v176 = vpop.f32.mrb[0].mxu0
    %v177 = vadd.f32 %v122, %v176
    %v178 = vpop.f32.mrb[0].mxu0
    %179 = vdwg.mxu0
    %v180 = vadd.f32 %v50, %v174
    %v181 = vadd.f32 %v51, %v177
    %182 = vst.msk [vmem:[#allocation7] sm:$0xff] %vm52, %v180
    %183 = vst.msk [vmem:[#allocation7 + $0x8] sm:$0xff] %vm52, %v181
    // Predicated region
    $region30: #{tpu_custom_call.1} parent=1 // pred_check
      _
    $region31: #{tpu_custom_call.1} parent=1 // pred_check_branch
      %185 = sbr.rel (0) target = $region33
    $region32: #{tpu_custom_call.1} parent=1 // pred_region
      %s187 = ssub.s32 256, 256
      %188 = vsyncadd [#allocation4], %s187
      %s189 = sshll.u32 [#allocation7], 4
      %s190 = int_to_ptr.vmem [resolvable:$true] %s189
      %195 = dma.vmem_to_hbm [thread:$0]  %s190, 256, %s5, [#allocation4], 128, 128, 8
    $region33: #{tpu_custom_call.1} parent=1 // pred_fallthru
      _
    // Predicated region
    $region34: #{tpu_custom_call.1} parent=1 // pred_check
      _
    $region35: #{tpu_custom_call.1} parent=1 // pred_check_branch
      %197 = sbr.rel (0) target = $region37
    $region36: #{tpu_custom_call.1} parent=1 // pred_region
      %198 = dma.done [#allocation4], 256
    $region37: #{tpu_custom_call.1} parent=1 // pred_fallthru
      _
    %199 = vsyncpa [#allocation3], 1
    %200 = vsyncpa [#allocation6], 1
    %201 = vsyncpa [#allocation4], 1

</llo_original>
